<compile_context>
chip_gen: v7x
topology: tpu7x:2x2x1
jax: 0.10.0
libtpu: 0.0.40
codegen_flags: <defaults>
</compile_context>

<pallas_src>
import functools

import jax
import jax.numpy as jnp
from jax import lax
from jax.experimental import pallas as pl
from jax.experimental.pallas import tpu as pltpu


_SOFTPLUS_THRESHOLD = 20.0  # nn.Softplus(beta=1, threshold=20)


def _round_up(x: int, k: int) -> int:
    return ((x + k - 1) // k) * k


def _softplus(x):
    # PyTorch softplus (beta=1): linear above the threshold, log(1+exp) below.
    return jnp.where(
        x > _SOFTPLUS_THRESHOLD,
        x,
        jnp.log(1.0 + jnp.exp(jnp.minimum(x, _SOFTPLUS_THRESHOLD))),
    )


def _soft_triplet_kernel(a_ref, p_ref, sqa_ref, sqp_ref, ta_ref, tp_ref,
                         out_ref, *, m_actual, n_actual, tm, matmul_dtype):
    # Cast for the MXU (no-op when the wrapper already produced matmul_dtype).
    a_mm = a_ref[...].astype(matmul_dtype)              # (tm, d_pad)
    p_mm = p_ref[...].astype(matmul_dtype)              # (n_pad, d_pad)

    sq_a = sqa_ref[...]                                 # (tm, 1)    f32
    sq_p = sqp_ref[...]                                 # (1, n_pad) f32
    ta = ta_ref[...]                                    # (1, n_pad) i32
    tp = tp_ref[...]                                    # (tm, 1)    i32
    n_pad = ta.shape[1]

    # MXU: contract the shared feature axis directly (trans-B matmul),
    # f32 accumulation -- no p.T materialization / XLU transpose.
    ap = lax.dot_general(
        a_mm, p_mm,
        dimension_numbers=(((1,), (1,)), ((), ())),
        preferred_element_type=jnp.float32,
    )                                                   # (tm, n_pad)

    # Squared distances only -- sqrt/clamp are deferred to the reduced vectors.
    dist2 = sq_a + sq_p - 2.0 * ap                      # (tm, n_pad)

    # mask[i, j] = (targets_a[j] == targets_p[i])  (as in the PyTorch code)
    same = tp == ta                                     # (tm, n_pad) bool
    if n_pad != n_actual:
        col_valid = lax.broadcasted_iota(jnp.int32, (1, n_pad), 1) < n_actual
        mask_pos = jnp.logical_and(same, col_valid)
        mask_neg = jnp.logical_and(jnp.logical_not(same), col_valid)
    else:
        mask_pos = same
        mask_neg = jnp.logical_not(same)

    # Hard mining over squared distances (sqrt/clamp are monotone, so taking
    # max/min first is mathematically identical to the PyTorch order).
    d2_ap = jnp.max(jnp.where(mask_pos, dist2, -jnp.inf), axis=1, keepdims=True)
    d2_an = jnp.min(jnp.where(mask_neg, dist2, jnp.inf), axis=1, keepdims=True)

    dist_ap = jnp.sqrt(jnp.maximum(d2_ap, 1e-12))       # (tm, 1)
    dist_an = jnp.sqrt(jnp.maximum(d2_an, 1e-12))       # (tm, 1)

    per_row = _softplus(dist_ap - dist_an)              # (tm, 1)

    # zero out padded anchor rows (loss is a SUM over real rows only)
    row_ids = pl.program_id(0) * tm + lax.broadcasted_iota(
        jnp.int32, (tm, 1), 0)
    out_ref[...] = jnp.where(row_ids < m_actual, per_row, 0.0)


def soft_triplet_loss_pallas(inputs_a, inputs_p, targets_a, targets_p, *,
                             block_m=None, matmul_dtype=jnp.bfloat16):
    m, d = inputs_a.shape
    n, d2 = inputs_p.shape
    assert d == d2, "feature dims must match"
    assert m == n, "mask indexing requires m == n (as in the PyTorch code)"

    # lane padding: feature dim and gallery dim to multiples of 128.
    d_pad = _round_up(max(d, 128), 128)
    n_pad = _round_up(max(n, 128), 128)

    # anchor-axis tile: multiple of 8 sublanes; aim for >= 2 grid steps so the
    # "parallel" axis gives megacore something to shard, shrink if the per-tile
    # (tm, n_pad) f32 temporaries would exceed a conservative VMEM budget.
    if block_m is None:
        block_m = min(max(8, _round_up(pl.cdiv(m, 2), 8)), 512)
        while block_m > 8 and 6 * block_m * n_pad * 4 > 24 * 1024 * 1024:
            block_m = max(8, ((block_m // 2) // 8) * 8)
    block_m = max(8, (block_m // 8) * 8)
    m_pad = _round_up(m, block_m)
    grid = (m_pad // block_m,)

    a32 = inputs_a.astype(jnp.float32)
    p32 = inputs_p.astype(jnp.float32)

    # Both squared norms precomputed in f32 in the wrapper (fuses into the
    # pad/cast fusion); sq_p is lane-dense (1, n_pad) -> no in-kernel transpose.
    sq_a = jnp.pad(jnp.sum(a32 * a32, axis=1, keepdims=True),
                   ((0, m_pad - m), (0, 0)))                       # (m_pad, 1)
    sq_p = jnp.pad(jnp.sum(p32 * p32, axis=1), (0, n_pad - n)
                   ).reshape(1, n_pad)                             # (1, n_pad)

    # Only pad/cast in the wrapper when padding is actually required; otherwise
    # stream the original arrays and cast to matmul_dtype inside the kernel
    # (saves a full HBM read+write prep pass over each matrix).
    if (m_pad != m) or (d_pad != d):
        a_arr = jnp.pad(a32, ((0, m_pad - m), (0, d_pad - d))).astype(matmul_dtype)
    else:
        a_arr = inputs_a
    if (n_pad != n) or (d_pad != d):
        p_arr = jnp.pad(p32, ((0, n_pad - n), (0, d_pad - d))).astype(matmul_dtype)
    else:
        p_arr = inputs_p

    ta = jnp.pad(targets_a.astype(jnp.int32), (0, n_pad - n),
                 constant_values=-1).reshape(1, n_pad)             # columns
    tp = jnp.pad(targets_p.astype(jnp.int32), (0, m_pad - m)
                 ).reshape(m_pad, 1)                               # rows

    # Explicit VMEM budget: double-buffered a tile + resident gallery (Pallas
    # keeps 2 buffers for constant-index blocks) + (tm, n_pad) f32 temporaries.
    a_item = jnp.dtype(a_arr.dtype).itemsize
    p_item = jnp.dtype(p_arr.dtype).itemsize
    vmem_est = (2 * block_m * d_pad * a_item          # streamed a tiles
                + 2 * n_pad * d_pad * p_item          # resident gallery
                + 6 * block_m * n_pad * 4             # dist2 / where temps
                + 4 * n_pad * 4                       # sq_p + targets_a rows
                + 8 * block_m * 4)                    # sq_a, tp, out blocks
    vmem_limit = None
    if vmem_est > 16 * 1024 * 1024:                   # v5e scoped default
        vmem_limit = min(int(vmem_est) + (4 << 20), 64 << 20)

    kernel = functools.partial(
        _soft_triplet_kernel, m_actual=m, n_actual=n, tm=block_m,
        matmul_dtype=matmul_dtype)

    per_row = pl.pallas_call(
        kernel,
        out_shape=jax.ShapeDtypeStruct((m_pad, 1), jnp.float32),
        grid=grid,
        in_specs=[
            pl.BlockSpec((block_m, d_pad), lambda i: (i, 0)),   # a tile
            pl.BlockSpec((n_pad, d_pad), lambda i: (0, 0)),     # p (resident)
            pl.BlockSpec((block_m, 1), lambda i: (i, 0)),       # ||a||^2 col
            pl.BlockSpec((1, n_pad), lambda i: (0, 0)),         # ||p||^2 row
            pl.BlockSpec((1, n_pad), lambda i: (0, 0)),         # targets_a row
            pl.BlockSpec((block_m, 1), lambda i: (i, 0)),       # targets_p col
        ],
        out_specs=pl.BlockSpec((block_m, 1), lambda i: (i, 0)),
        compiler_params=pltpu.CompilerParams(
            dimension_semantics=("parallel",),
            vmem_limit_bytes=vmem_limit),
    )(a_arr, p_arr, sq_a, sq_p, ta, tp)

    return jnp.sum(per_row)


def _reference_loss(a, p, ta, tp):
    """Pure-JAX reference mirroring the PyTorch forward exactly."""
    a = a.astype(jnp.float32)
    p = p.astype(jnp.float32)
    dist2 = (jnp.sum(a * a, axis=1)[:, None]
             + jnp.sum(p * p, axis=1)[None, :]
             - 2.0 * jnp.matmul(a, p.T, precision=lax.Precision.HIGHEST))
    dist = jnp.sqrt(jnp.maximum(dist2, 1e-12))
    mask = tp[:, None] == ta[None, :]
    dist_ap = jnp.max(jnp.where(mask, dist, -jnp.inf), axis=1)
    dist_an = jnp.min(jnp.where(mask, jnp.inf, dist), axis=1)
    return jnp.sum(_softplus(dist_ap - dist_an))


if __name__ == "__main__":
    batch, feat_dim = 8, 32

    key = jax.random.PRNGKey(0)
    ka, kp = jax.random.split(key)
    inputs_a = jax.random.normal(ka, (batch, feat_dim), dtype=jnp.float32)
    inputs_p = jax.random.normal(kp, (batch, feat_dim), dtype=jnp.float32)
    # 4 identities x 2 samples -> every anchor has >=1 positive and >=1 negative
    targets_a = jnp.array([0, 0, 1, 1, 2, 2, 3, 3], dtype=jnp.int32)
    targets_p = jnp.array([0, 0, 1, 1, 2, 2, 3, 3], dtype=jnp.int32)

    ref = _reference_loss(inputs_a, inputs_p, targets_a, targets_p)

    # f32 matmul path: tight check of the kernel semantics
    loss_f32 = soft_triplet_loss_pallas(
        inputs_a, inputs_p, targets_a, targets_p, matmul_dtype=jnp.float32)
    loss_f32 = jax.block_until_ready(loss_f32)
    assert jnp.allclose(loss_f32, ref, rtol=2e-3, atol=2e-3), (loss_f32, ref)

    # default bf16 matmul path (perf config): looser tolerance vs f32 reference
    loss_bf16 = soft_triplet_loss_pallas(
        inputs_a, inputs_p, targets_a, targets_p)
    loss_bf16 = jax.block_until_ready(loss_bf16)
    assert jnp.allclose(loss_bf16, ref, rtol=5e-2, atol=5e-2), (loss_bf16, ref)

    # also exercise a multi-tile grid (>= 2 anchor tiles) + column-padding path
    batch2 = 32
    ids = jnp.arange(batch2, dtype=jnp.int32) // 2     # 16 identities x 2 samples
    ka2, kp2 = jax.random.split(jax.random.PRNGKey(1))
    a2 = jax.random.normal(ka2, (batch2, feat_dim), dtype=jnp.float32)
    p2 = jax.random.normal(kp2, (batch2, feat_dim), dtype=jnp.float32)
    ref2 = _reference_loss(a2, p2, ids, ids)
    loss2 = jax.block_until_ready(
        soft_triplet_loss_pallas(a2, p2, ids, ids, matmul_dtype=jnp.float32))
    assert jnp.allclose(loss2, ref2, rtol=2e-3, atol=2e-3), (loss2, ref2)

    print("KERNEL_OK")
</pallas_src>

<mosaic_0001>
module attributes {stable_mosaic.version = 11 : i64} {
  func.func @_soft_triplet_kernel(%arg0: i32, %arg1: memref<8x128xf32, #tpu.memory_space<vmem>>, %arg2: memref<128x128xf32, #tpu.memory_space<vmem>>, %arg3: memref<8x1xf32, #tpu.memory_space<vmem>>, %arg4: memref<1x128xf32, #tpu.memory_space<vmem>>, %arg5: memref<1x128xi32, #tpu.memory_space<vmem>>, %arg6: memref<8x1xi32, #tpu.memory_space<vmem>>, %arg7: memref<8x1xf32, #tpu.memory_space<vmem>>) attributes {dimension_semantics = [#tpu.dimension_semantics<parallel>], iteration_bounds = array<i64: 1>, scalar_prefetch = 0 : i64, scratch_operands = 0 : i64, tpu.core_type = #tpu.core_type<tc>, window_params = [{transform_indices = @transform_0, window_bounds = array<i64: 8, 128>}, {pipeline_mode = #tpu.pipeline_mode<synchronous>, transform_indices = @transform_1, window_bounds = array<i64: 128, 128>}, {transform_indices = @transform_2, window_bounds = array<i64: 8, 1>}, {pipeline_mode = #tpu.pipeline_mode<synchronous>, transform_indices = @transform_3, window_bounds = array<i64: 1, 128>}, {pipeline_mode = #tpu.pipeline_mode<synchronous>, transform_indices = @transform_4, window_bounds = array<i64: 1, 128>}, {transform_indices = @transform_5, window_bounds = array<i64: 8, 1>}, {transform_indices = @transform_6, window_bounds = array<i64: 8, 1>}]} {
    %c0 = arith.constant 0 : index
    %c0_0 = arith.constant 0 : index
    %0 = vector.load %arg1[%c0, %c0_0] : memref<8x128xf32, #tpu.memory_space<vmem>>, vector<8x128xf32>
    %c0_1 = arith.constant 0 : index
    %c0_2 = arith.constant 0 : index
    %1 = vector.load %arg2[%c0_1, %c0_2] : memref<128x128xf32, #tpu.memory_space<vmem>>, vector<128x128xf32>
    %c0_3 = arith.constant 0 : index
    %c0_4 = arith.constant 0 : index
    %2 = vector.load %arg3[%c0_3, %c0_4] : memref<8x1xf32, #tpu.memory_space<vmem>>, vector<8x1xf32>
    %c0_5 = arith.constant 0 : index
    %c0_6 = arith.constant 0 : index
    %3 = vector.load %arg4[%c0_5, %c0_6] : memref<1x128xf32, #tpu.memory_space<vmem>>, vector<1x128xf32>
    %c0_7 = arith.constant 0 : index
    %c0_8 = arith.constant 0 : index
    %4 = vector.load %arg5[%c0_7, %c0_8] : memref<1x128xi32, #tpu.memory_space<vmem>>, vector<1x128xi32>
    %c0_9 = arith.constant 0 : index
    %c0_10 = arith.constant 0 : index
    %5 = vector.load %arg6[%c0_9, %c0_10] : memref<8x1xi32, #tpu.memory_space<vmem>>, vector<8x1xi32>
    %cst = arith.constant dense<0.000000e+00> : vector<8x128xf32>
    %6 = tpu.matmul %0, %1, %cst {dimension_numbers = #tpu.dot_dimension_numbers<[1], [1], [0], [0], [0, 0, 1, 0], [], []>} : vector<8x128xf32>, vector<128x128xf32>, vector<8x128xf32> -> vector<8x128xf32>
    %7 = vector.broadcast %2 : vector<8x1xf32> to vector<8x128xf32>
    %8 = vector.broadcast %3 : vector<1x128xf32> to vector<8x128xf32>
    %9 = arith.addf %7, %8 : vector<8x128xf32>
    %cst_11 = arith.constant 2.000000e+00 : f32
    %10 = vector.broadcast %cst_11 : f32 to vector<8x128xf32>
    %11 = arith.mulf %10, %6 : vector<8x128xf32>
    %12 = arith.subf %9, %11 : vector<8x128xf32>
    %13 = vector.broadcast %5 : vector<8x1xi32> to vector<8x128xi32>
    %14 = vector.broadcast %4 : vector<1x128xi32> to vector<8x128xi32>
    %15 = arith.cmpi eq, %13, %14 : vector<8x128xi32>
    %16 = tpu.iota {dimensions = array<i32: 1>} : vector<1x128xi32>
    %c8_i32 = arith.constant 8 : i32
    %17 = vector.broadcast %c8_i32 : i32 to vector<1x128xi32>
    %18 = arith.cmpi slt, %16, %17 : vector<1x128xi32>
    %19 = vector.broadcast %18 : vector<1x128xi1> to vector<8x128xi1>
    %20 = arith.andi %15, %19 : vector<8x128xi1>
    %cst_12 = arith.constant dense<true> : vector<8x128xi1>
    %21 = arith.xori %15, %cst_12 : vector<8x128xi1>
    %22 = vector.broadcast %18 : vector<1x128xi1> to vector<8x128xi1>
    %23 = arith.andi %21, %22 : vector<8x128xi1>
    %cst_13 = arith.constant 0xFF800000 : f32
    %24 = vector.broadcast %cst_13 : f32 to vector<8x128xf32>
    %25 = arith.select %20, %12, %24 : vector<8x128xi1>, vector<8x128xf32>
    %cst_14 = arith.constant dense<0xFF800000> : vector<8xf32>
    %26 = vector.multi_reduction <maximumf>, %25, %cst_14 [1] : vector<8x128xf32> to vector<8xf32>
    %27 = vector.shape_cast %26 : vector<8xf32> to vector<8x1xf32>
    %cst_15 = arith.constant 0x7F800000 : f32
    %28 = vector.broadcast %cst_15 : f32 to vector<8x128xf32>
    %29 = arith.select %23, %12, %28 : vector<8x128xi1>, vector<8x128xf32>
    %cst_16 = arith.constant dense<0x7F800000> : vector<8xf32>
    %30 = vector.multi_reduction <minimumf>, %29, %cst_16 [1] : vector<8x128xf32> to vector<8xf32>
    %31 = vector.shape_cast %30 : vector<8xf32> to vector<8x1xf32>
    %cst_17 = arith.constant 9.99999996E-13 : f32
    %32 = vector.broadcast %cst_17 : f32 to vector<8x1xf32>
    %33 = arith.maximumf %27, %32 : vector<8x1xf32>
    %34 = math.sqrt %33 : vector<8x1xf32>
    %cst_18 = arith.constant 9.99999996E-13 : f32
    %35 = vector.broadcast %cst_18 : f32 to vector<8x1xf32>
    %36 = arith.maximumf %31, %35 : vector<8x1xf32>
    %37 = math.sqrt %36 : vector<8x1xf32>
    %38 = arith.subf %34, %37 : vector<8x1xf32>
    %cst_19 = arith.constant 2.000000e+01 : f32
    %39 = vector.broadcast %cst_19 : f32 to vector<8x1xf32>
    %40 = arith.cmpf ogt, %38, %39 : vector<8x1xf32>
    %cst_20 = arith.constant 2.000000e+01 : f32
    %41 = vector.broadcast %cst_20 : f32 to vector<8x1xf32>
    %42 = arith.minimumf %38, %41 : vector<8x1xf32>
    %43 = math.exp %42 : vector<8x1xf32>
    %cst_21 = arith.constant 1.000000e+00 : f32
    %44 = vector.broadcast %cst_21 : f32 to vector<8x1xf32>
    %45 = arith.addf %44, %43 : vector<8x1xf32>
    %46 = math.log %45 : vector<8x1xf32>
    %47 = arith.select %40, %38, %46 : vector<8x1xi1>, vector<8x1xf32>
    %c8_i32_22 = arith.constant 8 : i32
    %48 = arith.muli %arg0, %c8_i32_22 : i32
    %49 = tpu.iota {dimensions = array<i32: 0>} : vector<8x1xi32>
    %50 = vector.broadcast %48 : i32 to vector<8x1xi32>
    %51 = arith.addi %50, %49 : vector<8x1xi32>
    %c8_i32_23 = arith.constant 8 : i32
    %52 = vector.broadcast %c8_i32_23 : i32 to vector<8x1xi32>
    %53 = arith.cmpi slt, %51, %52 : vector<8x1xi32>
    %cst_24 = arith.constant 0.000000e+00 : f32
    %54 = vector.broadcast %cst_24 : f32 to vector<8x1xf32>
    %55 = arith.select %53, %47, %54 : vector<8x1xi1>, vector<8x1xf32>
    %c0_25 = arith.constant 0 : index
    %c0_26 = arith.constant 0 : index
    %56 = vector.load %arg7[%c0_25, %c0_26] : memref<8x1xf32, #tpu.memory_space<vmem>>, vector<8x1xf32>
    tpu.vector_store %arg7[%c0_25, %c0_26], %55 {strides = array<i32>} : memref<8x1xf32, #tpu.memory_space<vmem>>, vector<8x1xf32>,
    return
  }
  func.func @transform_0(%arg0: i32) -> (i32, i32) {
    %c0_i32 = arith.constant 0 : i32
    %c0_i32_0 = arith.constant 0 : i32
    return %arg0, %c0_i32 : i32, i32
  }
  func.func @transform_1(%arg0: i32) -> (i32, i32) {
    %c0_i32 = arith.constant 0 : i32
    %c0_i32_0 = arith.constant 0 : i32
    %c0_i32_1 = arith.constant 0 : i32
    return %c0_i32, %c0_i32_0 : i32, i32
  }
  func.func @transform_2(%arg0: i32) -> (i32, i32) {
    %c0_i32 = arith.constant 0 : i32
    %c0_i32_0 = arith.constant 0 : i32
    return %arg0, %c0_i32 : i32, i32
  }
  func.func @transform_3(%arg0: i32) -> (i32, i32) {
    %c0_i32 = arith.constant 0 : i32
    %c0_i32_0 = arith.constant 0 : i32
    %c0_i32_1 = arith.constant 0 : i32
    return %c0_i32, %c0_i32_0 : i32, i32
  }
  func.func @transform_4(%arg0: i32) -> (i32, i32) {
    %c0_i32 = arith.constant 0 : i32
    %c0_i32_0 = arith.constant 0 : i32
    %c0_i32_1 = arith.constant 0 : i32
    return %c0_i32, %c0_i32_0 : i32, i32
  }
  func.func @transform_5(%arg0: i32) -> (i32, i32) {
    %c0_i32 = arith.constant 0 : i32
    %c0_i32_0 = arith.constant 0 : i32
    return %arg0, %c0_i32 : i32, i32
  }
  func.func @transform_6(%arg0: i32) -> (i32, i32) {
    %c0_i32 = arith.constant 0 : i32
    %c0_i32_0 = arith.constant 0 : i32
    return %arg0, %c0_i32 : i32, i32
  }
}

</mosaic_0001>

<llo_original>
// kernel: tpu_custom_call.1
$region0: #{tpu_custom_call.1}
  #allocation0 [shape = 'u32[]', space=smem, size = 0x4, offset = 0x4, fixed_abs, tag = 'smem constant byte address 0x4 - core index']
  #allocation1 [shape = 'u32[144,128]{1,0:T(1,128)}', space=vmem, size = 0x12000, scoped, tag = 'internal scratch']
  %s0 = inlined_call_operand.vmem [shape: f32[8,128], index: 0, kind: input, shape index: {}]
  %s1 = inlined_call_operand.hbm [shape: f32[128,128], index: 1, kind: input, shape index: {}]
  %s2 = inlined_call_operand.vmem [shape: f32[8,1], index: 2, kind: input, shape index: {}]
  %s3 = inlined_call_operand.vmem [shape: f32[1,128], index: 3, kind: input, shape index: {}]
  %s4 = inlined_call_operand.vmem [shape: s32[1,128], index: 4, kind: input, shape index: {}]
  %s5 = inlined_call_operand.vmem [shape: s32[8,1], index: 5, kind: input, shape index: {}]
  %s6 = inlined_call_operand.vmem [shape: f32[8,1], index: 6, kind: output, shape index: {}]
  %s7 = sld [smem:[#allocation0]]
  $region38: #{tpu_custom_call.1} parent=0
    _
  %s9 = ssub.s32 1, %s7
  %s10 = scalar_select 0, %s9, %s7
  $region1: #{tpu_custom_call.1} parent=0
    #allocation2 [shape = 'u8[65536]{0}', space=vmem, size = 0x10000, scoped, tag = 'input window, operand 1, single buffered']
    #allocation3 [shape = 's32[1]{0}', space=sflag, size = 0x4, scoped, tag = 'scoped memory for tpu_custom_call.1']
    %11 = vsyncpa [#allocation3], 0
    // Predicated region
    $region2: #{tpu_custom_call.1} parent=1 // pred_check
      _
    $region3: #{tpu_custom_call.1} parent=1 // pred_check_branch
      %13 = sbr.rel (0) target = $region5
    $region4: #{tpu_custom_call.1} parent=1 // pred_region
      _
    $region5: #{tpu_custom_call.1} parent=1 // pred_fallthru
      _
    // Predicated region
    $region6: #{tpu_custom_call.1} parent=1 // pred_check
      _
    $region7: #{tpu_custom_call.1} parent=1 // pred_check_branch
      %15 = sbr.rel (0) target = $region9
    $region8: #{tpu_custom_call.1} parent=1 // pred_region
      %s17 = ssub.s32 2048, 2048
      %18 = vsyncadd [#allocation3], %s17
      %s19 = sshll.u32 [#allocation2], 4
      %s20 = int_to_ptr.vmem [resolvable:$true] %s19
      %25 = dma.hbm_to_vmem [thread:$0]  %s1, 2048, %s20, [#allocation3], 128, 128, 8
    $region9: #{tpu_custom_call.1} parent=1 // pred_fallthru
      _
    // Predicated region
    $region10: #{tpu_custom_call.1} parent=1 // pred_check
      _
    $region11: #{tpu_custom_call.1} parent=1 // pred_check_branch
      %27 = sbr.rel (0) target = $region13
    $region12: #{tpu_custom_call.1} parent=1 // pred_region
      _
    $region13: #{tpu_custom_call.1} parent=1 // pred_fallthru
      _
    // Predicated region
    $region14: #{tpu_custom_call.1} parent=1 // pred_check
      _
    $region15: #{tpu_custom_call.1} parent=1 // pred_check_branch
      %29 = sbr.rel (0) target = $region17
    $region16: #{tpu_custom_call.1} parent=1 // pred_region
      _
    $region17: #{tpu_custom_call.1} parent=1 // pred_fallthru
      _
    // Predicated region
    $region18: #{tpu_custom_call.1} parent=1 // pred_check
      _
    $region19: #{tpu_custom_call.1} parent=1 // pred_check_branch
      %31 = sbr.rel (0) target = $region21
    $region20: #{tpu_custom_call.1} parent=1 // pred_region
      _
    $region21: #{tpu_custom_call.1} parent=1 // pred_fallthru
      _
    // Predicated region
    $region22: #{tpu_custom_call.1} parent=1 // pred_check
      _
    $region23: #{tpu_custom_call.1} parent=1 // pred_check_branch
      %33 = sbr.rel (0) target = $region25
    $region24: #{tpu_custom_call.1} parent=1 // pred_region
      _
    $region25: #{tpu_custom_call.1} parent=1 // pred_fallthru
      _
    // Predicated region
    $region26: #{tpu_custom_call.1} parent=1 // pred_check
      _
    $region27: #{tpu_custom_call.1} parent=1 // pred_check_branch
      %35 = sbr.rel (0) target = $region29
    $region28: #{tpu_custom_call.1} parent=1 // pred_region
      %36 = dma.done [#allocation3], 2048
    $region29: #{tpu_custom_call.1} parent=1 // pred_fallthru
      _
    %v37 = vld [vmem:[%s0] sm:$0xff]
    %v38 = vld [vmem:[#allocation2] sm:$0xff]
    %v39 = vld [vmem:[#allocation2 + $0x8] sm:$0xff]
    %v40 = vld [vmem:[#allocation2 + $0x10] sm:$0xff]
    %v41 = vld [vmem:[#allocation2 + $0x18] sm:$0xff]
    %v42 = vld [vmem:[#allocation2 + $0x20] sm:$0xff]
    %v43 = vld [vmem:[#allocation2 + $0x28] sm:$0xff]
    %v44 = vld [vmem:[#allocation2 + $0x30] sm:$0xff]
    %v45 = vld [vmem:[#allocation2 + $0x38] sm:$0xff]
    %v46 = vld [vmem:[#allocation2 + $0x40] sm:$0xff]
    %v47 = vld [vmem:[#allocation2 + $0x48] sm:$0xff]
    %v48 = vld [vmem:[#allocation2 + $0x50] sm:$0xff]
    %v49 = vld [vmem:[#allocation2 + $0x58] sm:$0xff]
    %v50 = vld [vmem:[#allocation2 + $0x60] sm:$0xff]
    %v51 = vld [vmem:[#allocation2 + $0x68] sm:$0xff]
    %v52 = vld [vmem:[#allocation2 + $0x70] sm:$0xff]
    %v53 = vld [vmem:[#allocation2 + $0x78] sm:$0xff]
    %v54 = vld [vmem:[%s2] sm:$0xff]
    %v55 = vld [vmem:[%s3] sm:$0x1]
    %v56 = vld [vmem:[%s4] sm:$0x1]
    %v57 = vld [vmem:[%s5] sm:$0xff]
    %58 = vmatprep.subr.mxu0 0.0
    %59 = vmatpush1.xpose.msra.mxu0 %v38
    %60 = vmatprep.subr.mxu0 0.0
    %61 = vmatpush1.xpose.msra.mxu0 %v39
    %62 = vmatprep.subr.mxu0 0.0
    %63 = vmatpush1.xpose.msra.mxu0 %v40
    %64 = vmatprep.subr.mxu0 0.0
    %65 = vmatpush1.xpose.msra.mxu0 %v41
    %66 = vmatprep.subr.mxu0 0.0
    %67 = vmatpush1.xpose.msra.mxu0 %v42
    %68 = vmatprep.subr.mxu0 0.0
    %69 = vmatpush1.xpose.msra.mxu0 %v43
    %70 = vmatprep.subr.mxu0 0.0
    %71 = vmatpush1.xpose.msra.mxu0 %v44
    %72 = vmatprep.subr.mxu0 0.0
    %73 = vmatpush1.xpose.msra.mxu0 %v45
    %74 = vmatprep.subr.mxu0 0.0
    %75 = vmatpush1.xpose.msra.mxu0 %v46
    %76 = vmatprep.subr.mxu0 0.0
    %77 = vmatpush1.xpose.msra.mxu0 %v47
    %78 = vmatprep.subr.mxu0 0.0
    %79 = vmatpush1.xpose.msra.mxu0 %v48
    %80 = vmatprep.subr.mxu0 0.0
    %81 = vmatpush1.xpose.msra.mxu0 %v49
    %82 = vmatprep.subr.mxu0 0.0
    %83 = vmatpush1.xpose.msra.mxu0 %v50
    %84 = vmatprep.subr.mxu0 0.0
    %85 = vmatpush1.xpose.msra.mxu0 %v51
    %86 = vmatprep.subr.mxu0 0.0
    %87 = vmatpush1.xpose.msra.mxu0 %v52
    %88 = vmatprep.subr.mxu0 0.0
    %89 = vmatpush1.xpose.msra.mxu0 %v53
    %90 = vmatprep.subr.mxu0 0.0
    %91 = vmatpush1.xpose.msra.mxu0 0.0
    %92 = vmatprep.subr.mxu0 0.0
    %93 = vmatpush1.xpose.msra.mxu0 0.0
    %94 = vmatprep.subr.mxu0 0.0
    %95 = vmatpush1.xpose.msra.mxu0 0.0
    %96 = vmatprep.subr.mxu0 0.0
    %97 = vmatpush1.xpose.msra.mxu0 0.0
    %98 = vmatprep.subr.mxu0 0.0
    %99 = vmatpush1.xpose.msra.mxu0 0.0
    %100 = vmatprep.subr.mxu0 0.0
    %101 = vmatpush1.xpose.msra.mxu0 0.0
    %102 = vmatprep.subr.mxu0 0.0
    %103 = vmatpush1.xpose.msra.mxu0 0.0
    %104 = vmatprep.subr.mxu0 0.0
    %105 = vmatpush1.xpose.msra.mxu0 0.0
    %106 = vmatprep.subr.mxu0 0.0
    %107 = vmatpush1.xpose.msra.mxu0 0.0
    %108 = vmatprep.subr.mxu0 0.0
    %109 = vmatpush1.xpose.msra.mxu0 0.0
    %110 = vmatprep.subr.mxu0 0.0
    %111 = vmatpush1.xpose.msra.mxu0 0.0
    %112 = vmatprep.subr.mxu0 0.0
    %113 = vmatpush1.xpose.msra.mxu0 0.0
    %114 = vmatprep.subr.mxu0 0.0
    %115 = vmatpush1.xpose.msra.mxu0 0.0
    %116 = vmatprep.subr.mxu0 0.0
    %117 = vmatpush1.xpose.msra.mxu0 0.0
    %118 = vmatprep.subr.mxu0 0.0
    %119 = vmatpush1.xpose.msra.mxu0 0.0
    %120 = vmatprep.subr.mxu0 0.0
    %121 = vmatpush1.xpose.msra.mxu0 0.0
    %122 = vmatprep.mubr.f32.mxu0 0.0
    %123 = vmatmul.mubr.f32.gmra.mrb[0].mxu0 %v37
    %v124 = vpop.f32.mrb[0].mxu0
    %v125 = vadd.f32 0.0, %v124
    %v126 = vpop.f32.mrb[0].mxu0
    %127 = vdwg.mxu0
    %129 = vset.pattern.permute.xlu0 0
    %130 = vperm.xlu0 %129, %v54
    %v131 = vpop.permute.xlu0 %130
    %v134 = vlaneseq
    %v135 = vshrl.u32 %v134, 7
    %v136 = vsub.s32 0, %v135
    %v137 = vrot.slane %v55, %v136
    %v139 = vadd.f32 %v131, %v137
    %v140 = vmul.f32 %v125, 2.0
    %v141 = vsub.f32 %v139, %v140
    %142 = vset.pattern.permute.xlu0 0
    %143 = vperm.xlu0 %142, %v57
    %v144 = vpop.permute.xlu0 %143
    %v145 = vlaneseq
    %v146 = vshrl.u32 %v145, 7
    %v147 = vsub.s32 0, %v146
    %v148 = vrot.slane %v56, %v147
    %vm149 = vcmp.eq.s32.totalorder %v144, %v148
    %v150 = vlaneseq
    %v151 = vand.u32 %v150, 127
    %vm152 = vcmp.lt.s32.totalorder %v151, 8
    %v153 = vsel %vm152, 1, 0
    %vm154 = vcmp.eq.s32.totalorder %v153, 1
    %vm155 = vmand %vm149, %vm154
    %vm156 = vmxor %vm149, 1
    %vm157 = vmand %vm156, %vm154
    %v158 = vsel %vm155, %v141, -inf
    %159 = vmax.xlane.f32.xlu0 %v158
    %v160 = vpop.xlane.xlu0 %159
    %v161 = vsel %vm157, %v141, inf
    %162 = vmin.xlane.f32.xlu0 %v161
    %v163 = vpop.xlane.xlu0 %162
    %v164 = vmax.f32 %v160, 1e-12
    %v165 = vrsqrt.pop %v164
    %v166 = vmul.f32 %v164, %v165
    %vm167 = vcmp.eq.f32.partialorder %v164, inf
    %v168 = vsel %vm167, %v164, %v166
    %vm169 = vcmp.eq.f32.partialorder %v164, 0.0
    %v170 = vand.u32 %v164, 2147483648
    %v171 = vsel %vm169, %v170, %v168
    %v172 = vmax.f32 %v163, 1e-12
    %v173 = vrsqrt.pop %v172
    %v174 = vmul.f32 %v172, %v173
    %vm175 = vcmp.eq.f32.partialorder %v172, inf
    %v176 = vsel %vm175, %v172, %v174
    %vm177 = vcmp.eq.f32.partialorder %v172, 0.0
    %v178 = vand.u32 %v172, 2147483648
    %v179 = vsel %vm177, %v178, %v176
    %v180 = vsub.f32 %v171, %v179
    %vm181 = vcmp.gt.f32.partialorder %v180, 20.0
    %v182 = vmin.f32 %v180, 20.0
    %v183 = vmul.f32 %v182, 1.442695
    %v184 = vpow.pop %v183
    %v185 = vadd.f32 %v184, 1.0
    %v186 = vlog2.pop %v185
    %v187 = vmul.f32 %v186, 0.6931472
    %v188 = vsel %vm181, %v180, %v187
    %s189 = smul.u32 0, 8
    %v190 = vlaneseq
    %v191 = vshrl.u32 %v190, 7
    %v192 = vstv %s189
    %v193 = vadd.s32 %v192, %v191
    %vm194 = vcmp.lt.s32.totalorder %v193, 8
    %v195 = vsel %vm194, %v188, 0.0
    %vm196 = vcmask 7168
    %197 = vst.msk [vmem:[%s6] sm:$0xff] %vm196, %v195
    // Predicated region
    $region30: #{tpu_custom_call.1} parent=1 // pred_check
      _
    $region31: #{tpu_custom_call.1} parent=1 // pred_check_branch
      %199 = sbr.rel (0) target = $region33
    $region32: #{tpu_custom_call.1} parent=1 // pred_region
      _
    $region33: #{tpu_custom_call.1} parent=1 // pred_fallthru
      _
    // Predicated region
    $region34: #{tpu_custom_call.1} parent=1 // pred_check
      _
    $region35: #{tpu_custom_call.1} parent=1 // pred_check_branch
      %201 = sbr.rel (0) target = $region37
    $region36: #{tpu_custom_call.1} parent=1 // pred_region
      _
    $region37: #{tpu_custom_call.1} parent=1 // pred_fallthru
      _
    %202 = vsyncpa [#allocation3], 1

</llo_original>
